<compile_context>
chip_gen: v5e
topology: v5e:2x2
jax: 0.10.0
libtpu: 0.0.40
codegen_flags: <defaults>
</compile_context>

<pallas_src>
import jax
import jax.numpy as jnp
from jax import lax
from jax.experimental import pallas as pl
from jax.experimental.pallas import tpu as pltpu


def _reg_l1_kernel(feat_ref, ind_ref, mask_ref, tgt_ref, out_ref, pred_acc_ref):
    h = pl.program_id(1)

    # Reset the (C, K) pred accumulator at the start of each batch's HW sweep.
    @pl.when(h == 0)
    def _():
        pred_acc_ref[...] = jnp.zeros_like(pred_acc_ref)

    feat = feat_ref[0]                         # (C, thw)  f32, HW chunk on lanes
    ids = ind_ref[0]                           # (1, K)    int32

    thw = feat.shape[1]
    K = ids.shape[1]

    # One-hot for this HW chunk: onehot[hw_local, k] = (hw_global == ids[k]).
    hw_base = h * thw
    iota = lax.broadcasted_iota(jnp.int32, (thw, K), 0) + hw_base
    onehot = (iota == ids).astype(feat.dtype)  # (thw, K), broadcast over rows

    # Partial gather on the MXU, output lane dim = K (lane-dense).
    pred_acc_ref[...] += jnp.dot(feat, onehot, preferred_element_type=jnp.float32)

    # Finalize this batch on the last HW chunk: masked L1 partial sum.
    @pl.when(h == pl.num_programs(1) - 1)
    def _():
        m = mask_ref[0]                        # (1, K) f32 (0/1 mask)
        t = tgt_ref[0]                         # (C, K) f32
        # mask is 0/1 => m * |pred - t| == |pred*m - t*m|
        partial = jnp.sum(m * jnp.abs(pred_acc_ref[...] - t))
        out_ref[...] = jnp.full(out_ref.shape, partial, dtype=out_ref.dtype)


def _pick_hw_tile(hw, max_tile=2048):
    """Largest lane-aligned divisor of hw that is <= max_tile (fallback: full hw)."""
    if hw <= max_tile:
        return hw
    if hw % 128 == 0:
        t = (max_tile // 128) * 128
        while t >= 128:
            if hw % t == 0:
                return t
            t -= 128
    return hw


def reg_l1_loss(output, mask, ind, target):
    """output: (B,C,H,W) f32, mask: (B,K), ind: (B,K) int, target: (B,K,C) f32 -> scalar."""
    B, C, H, W = output.shape
    K = ind.shape[1]
    HW = H * W

    # Pure reshape of NCHW (no transpose of the big tensor); small tensors are
    # reshaped/transposed so that K lands on the lane dim.
    feat = output.reshape(B, C, HW).astype(jnp.float32)               # (B, C, HW)
    ind3 = ind.astype(jnp.int32).reshape(B, 1, K)                     # (B, 1, K)
    mask_f = mask.astype(jnp.float32)
    mask3 = mask_f.reshape(B, 1, K)                                   # (B, 1, K)
    tgt_t = jnp.transpose(target.astype(jnp.float32), (0, 2, 1))      # (B, C, K) (small)

    thw = _pick_hw_tile(HW)
    n_hw = HW // thw

    partials = pl.pallas_call(
        _reg_l1_kernel,
        out_shape=jax.ShapeDtypeStruct((B, 1, 128), jnp.float32),
        grid_spec=pltpu.PrefetchScalarGridSpec(
            num_scalar_prefetch=0,
            grid=(B, n_hw),
            in_specs=[
                pl.BlockSpec((1, C, thw), lambda b, h: (b, 0, h)),    # feat chunk
                pl.BlockSpec((1, 1, K), lambda b, h: (b, 0, 0)),      # ind
                pl.BlockSpec((1, 1, K), lambda b, h: (b, 0, 0)),      # mask
                pl.BlockSpec((1, C, K), lambda b, h: (b, 0, 0)),      # target (C,K)
            ],
            out_specs=pl.BlockSpec((1, 1, 128), lambda b, h: (b, 0, 0)),
            scratch_shapes=[
                pltpu.VMEM((C, K), jnp.float32),    # partial pred accumulator
            ],
        ),
        compiler_params=pltpu.CompilerParams(
            # Batch axis is parallel (per-batch partial outputs, 2 TCs on v7x);
            # HW axis is a reduction into the pred accumulator.
            dimension_semantics=("parallel", "arbitrary"),
            vmem_limit_bytes=32 * 1024 * 1024,
        ),
    )(feat, ind3, mask3, tgt_t)

    total = jnp.sum(partials[:, 0, 0])
    # mask.sum() over the expanded (B, K, C) mask == C * sum(mask); trivial in XLA.
    msum = jnp.sum(mask_f) * jnp.float32(C)
    return total / (msum + jnp.float32(1e-4))


def _reg_l1_loss_ref(output, mask, ind, target):
    """Pure-JAX reference matching the PyTorch module."""
    B, C, H, W = output.shape
    feat = jnp.transpose(output, (0, 2, 3, 1)).reshape(B, H * W, C)
    pred = jnp.take_along_axis(feat, ind[..., None].astype(jnp.int32), axis=1)  # (B,K,C)
    m = jnp.broadcast_to(mask[..., None].astype(jnp.float32), pred.shape)
    loss = jnp.sum(jnp.abs(pred * m - target * m))
    return loss / (jnp.sum(m) + 1e-4)


if __name__ == "__main__":
    B, C, H, W, K = 2, 4, 16, 16, 8
    key = jax.random.PRNGKey(0)
    k1, k2, k3, k4 = jax.random.split(key, 4)

    output = jax.random.normal(k1, (B, C, H, W), dtype=jnp.float32)
    ind = jax.random.randint(k2, (B, K), 0, H * W, dtype=jnp.int32)
    mask = (jax.random.uniform(k3, (B, K)) > 0.3).astype(jnp.float32)
    target = jax.random.normal(k4, (B, K, C), dtype=jnp.float32)

    loss = reg_l1_loss(output, mask, ind, target)
    loss = jax.block_until_ready(loss)

    ref = _reg_l1_loss_ref(output, mask, ind, target)
    assert jnp.allclose(loss, ref, rtol=1e-5, atol=1e-5), (loss, ref)

    print("KERNEL_OK")
</pallas_src>

<mosaic_0001>
module attributes {stable_mosaic.version = 11 : i64} {
  func.func @_reg_l1_kernel(%arg0: i32, %arg1: i32, %arg2: memref<1x4x256xf32, #tpu.memory_space<vmem>>, %arg3: memref<1x1x8xi32, #tpu.memory_space<vmem>>, %arg4: memref<1x1x8xf32, #tpu.memory_space<vmem>>, %arg5: memref<1x4x8xf32, #tpu.memory_space<vmem>>, %arg6: memref<1x1x128xf32, #tpu.memory_space<vmem>>, %arg7: memref<4x8xf32, #tpu.memory_space<vmem>>) attributes {dimension_semantics = [#tpu.dimension_semantics<parallel>, #tpu.dimension_semantics<arbitrary>], iteration_bounds = array<i64: 2, 1>, scalar_prefetch = 0 : i64, scratch_operands = 1 : i64, tpu.core_type = #tpu.core_type<tc>, window_params = [{transform_indices = @transform_0, window_bounds = array<i64: 1, 4, 256>}, {transform_indices = @transform_1, window_bounds = array<i64: 1, 1, 8>}, {transform_indices = @transform_2, window_bounds = array<i64: 1, 1, 8>}, {transform_indices = @transform_3, window_bounds = array<i64: 1, 4, 8>}, {transform_indices = @transform_4, window_bounds = array<i64: 1, 1, 128>}]} {
    %c0_i32 = arith.constant 0 : i32
    %0 = arith.cmpi eq, %arg1, %c0_i32 : i32
    %1 = arith.extui %0 : i1 to i32
    %c0_i32_0 = arith.constant 0 : i32
    %2 = arith.cmpi ne, %1, %c0_i32_0 : i32
    scf.if %2 {
      %cst_12 = arith.constant 0.000000e+00 : f32
      %22 = vector.broadcast %cst_12 : f32 to vector<4x8xf32>
      %c0_13 = arith.constant 0 : index
      %c0_14 = arith.constant 0 : index
      %23 = vector.load %arg7[%c0_13, %c0_14] : memref<4x8xf32, #tpu.memory_space<vmem>>, vector<4x8xf32>
      tpu.vector_store %arg7[%c0_13, %c0_14], %22 {strides = array<i32>} : memref<4x8xf32, #tpu.memory_space<vmem>>, vector<4x8xf32>,
    } else {
    }
    %c0 = arith.constant 0 : index
    %c0_1 = arith.constant 0 : index
    %c0_2 = arith.constant 0 : index
    %3 = vector.load %arg2[%c0, %c0_1, %c0_2] : memref<1x4x256xf32, #tpu.memory_space<vmem>>, vector<1x4x256xf32>
    %4 = vector.shape_cast %3 : vector<1x4x256xf32> to vector<4x256xf32>
    %c0_3 = arith.constant 0 : index
    %c0_4 = arith.constant 0 : index
    %c0_5 = arith.constant 0 : index
    %5 = vector.load %arg3[%c0_3, %c0_4, %c0_5] : memref<1x1x8xi32, #tpu.memory_space<vmem>>, vector<1x1x8xi32>
    %6 = vector.shape_cast %5 : vector<1x1x8xi32> to vector<1x8xi32>
    %c256_i32 = arith.constant 256 : i32
    %7 = arith.muli %arg1, %c256_i32 : i32
    %8 = tpu.iota {dimensions = array<i32: 0>} : vector<256x8xi32>
    %9 = vector.broadcast %7 : i32 to vector<256x8xi32>
    %10 = arith.addi %8, %9 : vector<256x8xi32>
    %11 = vector.broadcast %6 : vector<1x8xi32> to vector<256x8xi32>
    %12 = arith.cmpi eq, %10, %11 : vector<256x8xi32>
    %13 = arith.extui %12 : vector<256x8xi1> to vector<256x8xi32>
    %14 = arith.sitofp %13 : vector<256x8xi32> to vector<256x8xf32>
    %c0_6 = arith.constant 0 : index
    %c0_7 = arith.constant 0 : index
    %15 = vector.load %arg7[%c0_6, %c0_7] : memref<4x8xf32, #tpu.memory_space<vmem>>, vector<4x8xf32>
    %cst = arith.constant dense<0.000000e+00> : vector<4x8xf32>
    %16 = tpu.matmul %4, %14, %cst {dimension_numbers = #tpu.dot_dimension_numbers<[1], [0], [0], [1], [0, 0, 1, 1], [], []>} : vector<4x256xf32>, vector<256x8xf32>, vector<4x8xf32> -> vector<4x8xf32>
    %17 = arith.addf %15, %16 : vector<4x8xf32>
    %c0_8 = arith.constant 0 : index
    %c0_9 = arith.constant 0 : index
    %18 = vector.load %arg7[%c0_8, %c0_9] : memref<4x8xf32, #tpu.memory_space<vmem>>, vector<4x8xf32>
    tpu.vector_store %arg7[%c0_8, %c0_9], %17 {strides = array<i32>} : memref<4x8xf32, #tpu.memory_space<vmem>>, vector<4x8xf32>,
    %c0_i32_10 = arith.constant 0 : i32
    %19 = arith.cmpi eq, %arg1, %c0_i32_10 : i32
    %20 = arith.extui %19 : i1 to i32
    %c0_i32_11 = arith.constant 0 : i32
    %21 = arith.cmpi ne, %20, %c0_i32_11 : i32
    scf.if %21 {
      %c0_12 = arith.constant 0 : index
      %c0_13 = arith.constant 0 : index
      %c0_14 = arith.constant 0 : index
      %22 = vector.load %arg4[%c0_12, %c0_13, %c0_14] : memref<1x1x8xf32, #tpu.memory_space<vmem>>, vector<1x1x8xf32>
      %23 = vector.shape_cast %22 : vector<1x1x8xf32> to vector<1x8xf32>
      %c0_15 = arith.constant 0 : index
      %c0_16 = arith.constant 0 : index
      %c0_17 = arith.constant 0 : index
      %24 = vector.load %arg5[%c0_15, %c0_16, %c0_17] : memref<1x4x8xf32, #tpu.memory_space<vmem>>, vector<1x4x8xf32>
      %25 = vector.shape_cast %24 : vector<1x4x8xf32> to vector<4x8xf32>
      %c0_18 = arith.constant 0 : index
      %c0_19 = arith.constant 0 : index
      %26 = vector.load %arg7[%c0_18, %c0_19] : memref<4x8xf32, #tpu.memory_space<vmem>>, vector<4x8xf32>
      %27 = arith.subf %26, %25 : vector<4x8xf32>
      %28 = math.absf %27 : vector<4x8xf32>
      %29 = vector.broadcast %23 : vector<1x8xf32> to vector<4x8xf32>
      %30 = arith.mulf %29, %28 : vector<4x8xf32>
      %31 = vector.shape_cast %30 : vector<4x8xf32> to vector<1x4x8xf32>
      %cst_20 = arith.constant dense<0.000000e+00> : vector<1xf32>
      %32 = vector.multi_reduction <add>, %31, %cst_20 [1, 2] : vector<1x4x8xf32> to vector<1xf32>
      %33 = vector.shape_cast %32 : vector<1xf32> to vector<1x1x1xf32>
      %34 = vector.extract %33[0, 0, 0] : f32 from vector<1x1x1xf32>
      %35 = vector.broadcast %34 : f32 to vector<1x1x128xf32>
      %c0_21 = arith.constant 0 : index
      %c0_22 = arith.constant 0 : index
      %c0_23 = arith.constant 0 : index
      %36 = vector.load %arg6[%c0_21, %c0_22, %c0_23] : memref<1x1x128xf32, #tpu.memory_space<vmem>>, vector<1x1x128xf32>
      tpu.vector_store %arg6[%c0_21, %c0_22, %c0_23], %35 {strides = array<i32>} : memref<1x1x128xf32, #tpu.memory_space<vmem>>, vector<1x1x128xf32>,
    } else {
    }
    return
  }
  func.func @transform_0(%arg0: i32, %arg1: i32) -> (i32, i32, i32) {
    %c0_i32 = arith.constant 0 : i32
    %c0_i32_0 = arith.constant 0 : i32
    return %arg0, %c0_i32, %arg1 : i32, i32, i32
  }
  func.func @transform_1(%arg0: i32, %arg1: i32) -> (i32, i32, i32) {
    %c0_i32 = arith.constant 0 : i32
    %c0_i32_0 = arith.constant 0 : i32
    %c0_i32_1 = arith.constant 0 : i32
    return %arg0, %c0_i32, %c0_i32_0 : i32, i32, i32
  }
  func.func @transform_2(%arg0: i32, %arg1: i32) -> (i32, i32, i32) {
    %c0_i32 = arith.constant 0 : i32
    %c0_i32_0 = arith.constant 0 : i32
    %c0_i32_1 = arith.constant 0 : i32
    return %arg0, %c0_i32, %c0_i32_0 : i32, i32, i32
  }
  func.func @transform_3(%arg0: i32, %arg1: i32) -> (i32, i32, i32) {
    %c0_i32 = arith.constant 0 : i32
    %c0_i32_0 = arith.constant 0 : i32
    %c0_i32_1 = arith.constant 0 : i32
    return %arg0, %c0_i32, %c0_i32_0 : i32, i32, i32
  }
  func.func @transform_4(%arg0: i32, %arg1: i32) -> (i32, i32, i32) {
    %c0_i32 = arith.constant 0 : i32
    %c0_i32_0 = arith.constant 0 : i32
    %c0_i32_1 = arith.constant 0 : i32
    return %arg0, %c0_i32, %c0_i32_0 : i32, i32, i32
  }
}

</mosaic_0001>

<llo_original>
// kernel: tpu_custom_call.1
$region0: #{tpu_custom_call.1}
  #allocation0 [shape = 'u32[]', space=smem, size = 0x4, offset = 0x4, fixed_abs, tag = 'smem constant byte address 0x4 - core index']
  #allocation1 [shape = 'u32[72,128]{1,0:T(1,128)}', space=vmem, size = 0x9000, scoped, tag = 'internal scratch']
  #allocation2 [shape = 'f32[4,8]{1,0:T(4,128)}', space=vmem, size = 0x800, scoped, tag = 'scratch operand']
  %s0 = inlined_call_operand.hbm [shape: f32[2,4,256], index: 0, kind: input, shape index: {}]
  %s1 = inlined_call_operand.hbm [shape: s32[2,1,8], index: 1, kind: input, shape index: {}]
  %s2 = inlined_call_operand.hbm [shape: f32[2,1,8], index: 2, kind: input, shape index: {}]
  %s3 = inlined_call_operand.hbm [shape: f32[2,4,8], index: 3, kind: input, shape index: {}]
  %s4 = inlined_call_operand.hbm [shape: f32[2,1,128], index: 4, kind: output, shape index: {}]
  %s5 = sld [smem:[#allocation0]]
  $region73: #{tpu_custom_call.1} parent=0
    _
  %s7 = ssub.s32 1, %s5
  %s8 = scalar_select 0, %s7, %s5
  $region1: #{tpu_custom_call.1} parent=0
    #allocation3 [shape = 'u8[8192]{0}', space=vmem, size = 0x2000, scoped, tag = 'input window, operand 0']
    #allocation4 [shape = 's32[2]{0}', space=sflag, size = 0x8, scoped, tag = 'scoped memory for tpu_custom_call.1']
    #allocation5 [shape = 's32[2]{0}', space=sflag, size = 0x8, scoped, tag = 'scoped memory for tpu_custom_call.1']
    #allocation6 [shape = 'u8[1024]{0}', space=vmem, size = 0x400, scoped, tag = 'input window, operand 1']
    #allocation7 [shape = 's32[2]{0}', space=sflag, size = 0x8, scoped, tag = 'scoped memory for tpu_custom_call.1']
    #allocation8 [shape = 'u8[1024]{0}', space=vmem, size = 0x400, scoped, tag = 'input window, operand 2']
    #allocation9 [shape = 'u8[4096]{0}', space=vmem, size = 0x1000, scoped, tag = 'input window, operand 3']
    #allocation10 [shape = 's32[2]{0}', space=sflag, size = 0x8, scoped, tag = 'scoped memory for tpu_custom_call.1']
    #allocation11 [shape = 'u8[1024]{0}', space=vmem, size = 0x400, scoped, tag = 'output window, operand 0']
    %9 = vsyncpa [#allocation4], 0
    %s10 = scalar_lea.sflag [#allocation4], 1
    %11 = vsyncpa %s10, 0
    %12 = vsyncpa [#allocation7], 0
    %s13 = scalar_lea.sflag [#allocation7], 1
    %14 = vsyncpa %s13, 0
    %15 = vsyncpa [#allocation10], 0
    %s16 = scalar_lea.sflag [#allocation10], 1
    %17 = vsyncpa %s16, 0
    %18 = vsyncpa [#allocation5], 0
    %s19 = scalar_lea.sflag [#allocation5], 1
    %20 = vsyncpa %s19, 0
    loop: start=0, step=1, limit=4
    $region2: #{tpu_custom_call.1} parent=1 // loop_pre_header
      _
    $region3: #{tpu_custom_call.1} parent=1 // loop_header
      %s22 = sphi 0, %s26
      %p23 = scmp.ge.s32.totalorder %s22, 4
      %s29 = sphi 0, %s41
      %s30 = sphi 0, %s37
      %s31 = sphi 0, %s29
      %s32 = sphi 0, %s30
      %s33 = sphi 0, %s31
      %s34 = sphi 0, %s32
      %s46 = sphi 0, %s48
      %s49 = sphi 0, %s46
      %s50 = sphi 0, %s49
      %s66 = sphi 0, %s50
      %s72 = sphi 0, %s74
      %s75 = sphi 0, %s72
      %s76 = sphi 0, %s75
      %s92 = sphi 0, %s76
      %s98 = sphi 0, %s100
      %s101 = sphi 0, %s98
      %s102 = sphi 0, %s101
      %s118 = sphi 0, %s102
      %s124 = sphi 0, %s126
      %s127 = sphi 0, %s124
      %s128 = sphi 0, %s127
      %s144 = sphi 0, %s128
      %s150 = sphi 0, %s152
      %s153 = sphi 0, %s150
      %s154 = sphi 0, %s153
      %s170 = sphi 0, %s154
    $region4: #{tpu_custom_call.1} parent=1 // loop_header_branch
      %25 = sbr.rel (%p23) target = $region8
    $region5: #{tpu_custom_call.1} parent=1 // loop_body
      %s27 = ssub.s32 %s22, 1
      %s28 = ssub.s32 %s22, 2
      %s35 = sadd.s32 1, %s30
      %p36 = scmp.ge.s32.totalorder %s35, 1
      %s37 = scalar_select %p36, 0, %s35
      %s38 = sadd.s32 1, %s29
      %s39 = scalar_select %p36, %s38, %s29
      %p40 = scmp.ge.s32.totalorder %s39, 2
      %s41 = scalar_select %p40, 0, %s39
      %s42 = ssub.s32 %s29, %s41
      %s43 = ssub.s32 %s30, %s37
      %s44 = sor.u32 %s42, %s43
      %p45 = scmp.eq.s32.totalorder %s44, 0
      %s47 = sadd.s32 %s46, 1
      %s48 = scalar_select %p45, %s46, %s47
      %p51 = pneg %p45
      %p52 = scmp.eq.s32.totalorder %s22, 1
      %p53 = por %p51, %p52
      %p54 = scmp.ne.s32.totalorder %s46, %s49
      %p55 = scmp.eq.s32.totalorder %s22, 0
      %p56 = por %p54, %p55
      %p57 = scmp.ne.s32.totalorder %s46, %s49
      %p58 = scmp.eq.s32.totalorder %s27, 1
      %p59 = por %p57, %p58
      %p60 = scmp.ne.s32.totalorder %s49, %s50
      %p61 = scmp.eq.s32.totalorder %s27, 0
      %p62 = por %p60, %p61
      %p63 = scmp.ne.s32.totalorder %s49, %s50
      %p64 = scmp.eq.s32.totalorder %s28, 1
      %p65 = por %p63, %p64
      %p67 = scmp.ne.s32.totalorder %s50, %s66
      %p68 = scmp.eq.s32.totalorder %s28, 0
      %p69 = por %p67, %p68
      %s70 = ssub.s32 %s29, %s41
      %p71 = scmp.eq.s32.totalorder %s70, 0
      %s73 = sadd.s32 %s72, 1
      %s74 = scalar_select %p71, %s72, %s73
      %p77 = pneg %p71
      %p78 = scmp.eq.s32.totalorder %s22, 1
      %p79 = por %p77, %p78
      %p80 = scmp.ne.s32.totalorder %s72, %s75
      %p81 = scmp.eq.s32.totalorder %s22, 0
      %p82 = por %p80, %p81
      %p83 = scmp.ne.s32.totalorder %s72, %s75
      %p84 = scmp.eq.s32.totalorder %s27, 1
      %p85 = por %p83, %p84
      %p86 = scmp.ne.s32.totalorder %s75, %s76
      %p87 = scmp.eq.s32.totalorder %s27, 0
      %p88 = por %p86, %p87
      %p89 = scmp.ne.s32.totalorder %s75, %s76
      %p90 = scmp.eq.s32.totalorder %s28, 1
      %p91 = por %p89, %p90
      %p93 = scmp.ne.s32.totalorder %s76, %s92
      %p94 = scmp.eq.s32.totalorder %s28, 0
      %p95 = por %p93, %p94
      %s96 = ssub.s32 %s29, %s41
      %p97 = scmp.eq.s32.totalorder %s96, 0
      %s99 = sadd.s32 %s98, 1
      %s100 = scalar_select %p97, %s98, %s99
      %p103 = pneg %p97
      %p104 = scmp.eq.s32.totalorder %s22, 1
      %p105 = por %p103, %p104
      %p106 = scmp.ne.s32.totalorder %s98, %s101
      %p107 = scmp.eq.s32.totalorder %s22, 0
      %p108 = por %p106, %p107
      %p109 = scmp.ne.s32.totalorder %s98, %s101
      %p110 = scmp.eq.s32.totalorder %s27, 1
      %p111 = por %p109, %p110
      %p112 = scmp.ne.s32.totalorder %s101, %s102
      %p113 = scmp.eq.s32.totalorder %s27, 0
      %p114 = por %p112, %p113
      %p115 = scmp.ne.s32.totalorder %s101, %s102
      %p116 = scmp.eq.s32.totalorder %s28, 1
      %p117 = por %p115, %p116
      %p119 = scmp.ne.s32.totalorder %s102, %s118
      %p120 = scmp.eq.s32.totalorder %s28, 0
      %p121 = por %p119, %p120
      %s122 = ssub.s32 %s29, %s41
      %p123 = scmp.eq.s32.totalorder %s122, 0
      %s125 = sadd.s32 %s124, 1
      %s126 = scalar_select %p123, %s124, %s125
      %p129 = pneg %p123
      %p130 = scmp.eq.s32.totalorder %s22, 1
      %p131 = por %p129, %p130
      %p132 = scmp.ne.s32.totalorder %s124, %s127
      %p133 = scmp.eq.s32.totalorder %s22, 0
      %p134 = por %p132, %p133
      %p135 = scmp.ne.s32.totalorder %s124, %s127
      %p136 = scmp.eq.s32.totalorder %s27, 1
      %p137 = por %p135, %p136
      %p138 = scmp.ne.s32.totalorder %s127, %s128
      %p139 = scmp.eq.s32.totalorder %s27, 0
      %p140 = por %p138, %p139
      %p141 = scmp.ne.s32.totalorder %s127, %s128
      %p142 = scmp.eq.s32.totalorder %s28, 1
      %p143 = por %p141, %p142
      %p145 = scmp.ne.s32.totalorder %s128, %s144
      %p146 = scmp.eq.s32.totalorder %s28, 0
      %p147 = por %p145, %p146
      %s148 = ssub.s32 %s29, %s41
      %p149 = scmp.eq.s32.totalorder %s148, 0
      %s151 = sadd.s32 %s150, 1
      %s152 = scalar_select %p149, %s150, %s151
      %p155 = pneg %p149
      %p156 = scmp.eq.s32.totalorder %s22, 1
      %p157 = por %p155, %p156
      %p158 = scmp.ne.s32.totalorder %s150, %s153
      %p159 = scmp.eq.s32.totalorder %s22, 0
      %p160 = por %p158, %p159
      %p161 = scmp.ne.s32.totalorder %s150, %s153
      %p162 = scmp.eq.s32.totalorder %s27, 1
      %p163 = por %p161, %p162
      %p164 = scmp.ne.s32.totalorder %s153, %s154
      %p165 = scmp.eq.s32.totalorder %s27, 0
      %p166 = por %p164, %p165
      %p167 = scmp.ne.s32.totalorder %s153, %s154
      %p168 = scmp.eq.s32.totalorder %s28, 1
      %p169 = por %p167, %p168
      %p171 = scmp.ne.s32.totalorder %s154, %s170
      %p172 = scmp.eq.s32.totalorder %s28, 0
      %p173 = por %p171, %p172
      %p174 = scmp.le.s32.totalorder 1, %s22
      %p175 = scmp.lt.s32.totalorder %s22, 3
      %p176 = pnand %p174, %p175
      %p177 = pneg %p176
      // Predicated region
      $region9: #{tpu_custom_call.1} parent=5 // pred_check
        _
      $region10: #{tpu_custom_call.1} parent=5 // pred_check_branch
        %179 = sbr.rel (%p176) target = $region12
      $region11: #{tpu_custom_call.1} parent=5 // pred_region
        %s180 = ssub.s32 %s22, 1
      $region12: #{tpu_custom_call.1} parent=5 // pred_fallthru
        _
      %p181 = scmp.lt.s32.totalorder %s22, 2
      // Predicated region
      $region13: #{tpu_custom_call.1} parent=5 // pred_check
        %p182 = pneg %p181
      $region14: #{tpu_custom_call.1} parent=5 // pred_check_branch
        %184 = sbr.rel (%p182) target = $region16
      $region15: #{tpu_custom_call.1} parent=5 // pred_region
        // Predicated region
        $region17: #{tpu_custom_call.1} parent=15 // pred_check
          %p185 = pneg %p56
        $region18: #{tpu_custom_call.1} parent=15 // pred_check_branch
          %187 = sbr.rel (%p185) target = $region20
        $region19: #{tpu_custom_call.1} parent=15 // pred_region
          %s188 = sand.u32 %s46, 1
          %s189 = scalar_lea.sflag [#allocation4], %s188
          %s190 = sand.u32 %s46, 1
          %s191 = smul.addr %s190, 8
          %s192 = scalar_lea.vmem [#allocation3], %s191
          %s193 = smul.u32 2, %s30
          %195 = vsyncadd %s189, 0
          %s196 = smul.addr %s29, 2
          %s197 = sadd.s32 %s193, %s196
          %s198 = smul.addr %s197, 4
          %s199 = scalar_lea.hbm %s0, %s198
          %s201 = sshll.u32 %s199, 4
          %s202 = int_to_ptr.hbm [resolvable:$true] %s201
          %s203 = sshll.u32 %s192, 4
          %s204 = int_to_ptr.vmem [resolvable:$true] %s203
          %206 = dma.hbm_to_vmem [thread:$0]  %s202, 128, %s204, %s189
        $region20: #{tpu_custom_call.1} parent=15 // pred_fallthru
          _
        // Predicated region
        $region21: #{tpu_custom_call.1} parent=15 // pred_check
          %p207 = pneg %p82
        $region22: #{tpu_custom_call.1} parent=15 // pred_check_branch
          %209 = sbr.rel (%p207) target = $region24
        $region23: #{tpu_custom_call.1} parent=15 // pred_region
          %s210 = sand.u32 %s22, 1
          %s211 = scalar_lea.sflag [#allocation7], %s210
          %s212 = sand.u32 %s72, 1
          %s213 = scalar_lea.vmem [#allocation6], %s212
          %215 = vsyncadd %s211, 0
          %s216 = scalar_lea.hbm %s1, %s29
          %s218 = sshll.u32 %s216, 4
          %s219 = int_to_ptr.hbm [resolvable:$true] %s218
          %s220 = sshll.u32 %s213, 4
          %s221 = int_to_ptr.vmem [resolvable:$true] %s220
          %223 = dma.hbm_to_vmem [thread:$0]  %s219, 16, %s221, %s211
        $region24: #{tpu_custom_call.1} parent=15 // pred_fallthru
          _
        // Predicated region
        $region25: #{tpu_custom_call.1} parent=15 // pred_check
          %p224 = pneg %p108
        $region26: #{tpu_custom_call.1} parent=15 // pred_check_branch
          %226 = sbr.rel (%p224) target = $region28
        $region27: #{tpu_custom_call.1} parent=15 // pred_region
          %s227 = sand.u32 %s22, 1
          %s228 = scalar_lea.sflag [#allocation7], %s227
          %s229 = sand.u32 %s98, 1
          %s230 = scalar_lea.vmem [#allocation8], %s229
          %232 = vsyncadd %s228, 0
          %s233 = scalar_lea.hbm %s2, %s29
          %s235 = sshll.u32 %s233, 4
          %s236 = int_to_ptr.hbm [resolvable:$true] %s235
          %s237 = sshll.u32 %s230, 4
          %s238 = int_to_ptr.vmem [resolvable:$true] %s237
          %240 = dma.hbm_to_vmem [thread:$0]  %s236, 16, %s238, %s228
        $region28: #{tpu_custom_call.1} parent=15 // pred_fallthru
          _
        // Predicated region
        $region29: #{tpu_custom_call.1} parent=15 // pred_check
          %p241 = pneg %p134
        $region30: #{tpu_custom_call.1} parent=15 // pred_check_branch
          %243 = sbr.rel (%p241) target = $region32
        $region31: #{tpu_custom_call.1} parent=15 // pred_region
          %s244 = sand.u32 %s124, 1
          %s245 = scalar_lea.sflag [#allocation10], %s244
          %s246 = sand.u32 %s124, 1
          %s247 = smul.addr %s246, 4
          %s248 = scalar_lea.vmem [#allocation9], %s247
          %250 = vsyncadd %s245, 0
          %s251 = smul.addr %s29, 4
          %s252 = scalar_lea.hbm %s3, %s251
          %s254 = sshll.u32 %s252, 4
          %s255 = int_to_ptr.hbm [resolvable:$true] %s254
          %s256 = sshll.u32 %s248, 4
          %s257 = int_to_ptr.vmem [resolvable:$true] %s256
          %259 = dma.hbm_to_vmem [thread:$0]  %s255, 64, %s257, %s245
        $region32: #{tpu_custom_call.1} parent=15 // pred_fallthru
          _
      $region16: #{tpu_custom_call.1} parent=5 // pred_fallthru
        _
      %p260 = scmp.le.s32.totalorder 1, %s22
      %p261 = scmp.lt.s32.totalorder %s22, 3
      %p262 = pnand %p260, %p261
      %p263 = pneg %p262
      // Predicated region
      $region33: #{tpu_custom_call.1} parent=5 // pred_check
        _
      $region34: #{tpu_custom_call.1} parent=5 // pred_check_branch
        %265 = sbr.rel (%p262) target = $region36
      $region35: #{tpu_custom_call.1} parent=5 // pred_region
        %s266 = ssub.s32 %s22, 1
        %s267 = sand.u32 %s49, 1
        %s268 = scalar_lea.sflag [#allocation4], %s267
        %s269 = sand.u32 %s49, 1
        %s270 = smul.addr %s269, 8
        %s271 = scalar_lea.vmem [#allocation3], %s270
        // Predicated region
        $region37: #{tpu_custom_call.1} parent=35 // pred_check
          %p272 = pneg %p62
        $region38: #{tpu_custom_call.1} parent=35 // pred_check_branch
          %274 = sbr.rel (%p272) target = $region40
        $region39: #{tpu_custom_call.1} parent=35 // pred_region
          %276 = dma.done %s268, 128
        $region40: #{tpu_custom_call.1} parent=35 // pred_fallthru
          _
        %s277 = sand.u32 %s27, 1
        %s278 = scalar_lea.sflag [#allocation7], %s277
        %s279 = sand.u32 %s75, 1
        %s280 = scalar_lea.vmem [#allocation6], %s279
        // Predicated region
        $region41: #{tpu_custom_call.1} parent=35 // pred_check
          %p281 = pneg %p88
        $region42: #{tpu_custom_call.1} parent=35 // pred_check_branch
          %283 = sbr.rel (%p281) target = $region44
        $region43: #{tpu_custom_call.1} parent=35 // pred_region
          %285 = dma.done %s278, 16
        $region44: #{tpu_custom_call.1} parent=35 // pred_fallthru
          _
        %s286 = sand.u32 %s27, 1
        %s287 = scalar_lea.sflag [#allocation7], %s286
        %s288 = sand.u32 %s101, 1
        %s289 = scalar_lea.vmem [#allocation8], %s288
        // Predicated region
        $region45: #{tpu_custom_call.1} parent=35 // pred_check
          %p290 = pneg %p114
        $region46: #{tpu_custom_call.1} parent=35 // pred_check_branch
          %292 = sbr.rel (%p290) target = $region48
        $region47: #{tpu_custom_call.1} parent=35 // pred_region
          %294 = dma.done %s287, 16
        $region48: #{tpu_custom_call.1} parent=35 // pred_fallthru
          _
        %s295 = sand.u32 %s127, 1
        %s296 = scalar_lea.sflag [#allocation10], %s295
        %s297 = sand.u32 %s127, 1
        %s298 = smul.addr %s297, 4
        %s299 = scalar_lea.vmem [#allocation9], %s298
        // Predicated region
        $region49: #{tpu_custom_call.1} parent=35 // pred_check
          %p300 = pneg %p140
        $region50: #{tpu_custom_call.1} parent=35 // pred_check_branch
          %302 = sbr.rel (%p300) target = $region52
        $region51: #{tpu_custom_call.1} parent=35 // pred_region
          %304 = dma.done %s296, 64
        $region52: #{tpu_custom_call.1} parent=35 // pred_fallthru
          _
        %s305 = sand.u32 %s49, 1
        %s306 = scalar_lea.sflag [#allocation4], %s305
        %s307 = sand.u32 %s49, 1
        %s308 = smul.addr %s307, 8
        %s309 = scalar_lea.vmem [#allocation3], %s308
        %p310 = pneg %p62
        %p311 = pneg %p59
        %s312 = sand.u32 %s27, 1
        %s313 = scalar_lea.sflag [#allocation7], %s312
        %s314 = sand.u32 %s75, 1
        %s315 = scalar_lea.vmem [#allocation6], %s314
        %p316 = pneg %p88
        %p317 = pneg %p85
        %s318 = sand.u32 %s27, 1
        %s319 = scalar_lea.sflag [#allocation7], %s318
        %s320 = sand.u32 %s101, 1
        %s321 = scalar_lea.vmem [#allocation8], %s320
        %p322 = pneg %p114
        %p323 = pneg %p111
        %s324 = sand.u32 %s127, 1
        %s325 = scalar_lea.sflag [#allocation10], %s324
        %s326 = sand.u32 %s127, 1
        %s327 = smul.addr %s326, 4
        %s328 = scalar_lea.vmem [#allocation9], %s327
        %p329 = pneg %p140
        %p330 = pneg %p137
        %p331 = pneg %p166
        %p332 = pneg %p163
        %s333 = sand.u32 %s153, 1
        %s334 = scalar_lea.sflag [#allocation5], %s333
        %s335 = sand.u32 %s153, 1
        %s336 = scalar_lea.vmem [#allocation11], %s335
        %s337 = smul.u32 2, %s32
        %p338 = scmp.eq.s32.totalorder %s32, 0
        // Predicated region
        $region53: #{tpu_custom_call.1} parent=35 // pred_check
          %p339 = pneg %p338
        $region54: #{tpu_custom_call.1} parent=35 // pred_check_branch
          %341 = sbr.rel (%p339) target = $region56
        $region55: #{tpu_custom_call.1} parent=35 // pred_region
          %vm342 = vcmask 60416
          %343 = vst.msk [vmem:[#allocation2] sm:$0xf] %vm342, 0.0
        $region56: #{tpu_custom_call.1} parent=35 // pred_fallthru
          _
        %v344 = vld [vmem:[%s271] sm:$0xff]
        %v345 = vld [vmem:[%s280] sm:$0x1]
        %s346 = smul.u32 %s32, 256
        %v347 = vlaneseq
        %v348 = vshrl.u32 %v347, 7
        %v349 = vadd.s32 %v348, 8
        %v350 = vadd.s32 %v348, 16
        %v351 = vadd.s32 %v348, 24
        %v352 = vadd.s32 %v348, 32
        %v353 = vadd.s32 %v348, 40
        %v354 = vadd.s32 %v348, 48
        %v355 = vadd.s32 %v348, 56
        %v356 = vadd.s32 %v348, 64
        %v357 = vadd.s32 %v348, 72
        %v358 = vadd.s32 %v348, 80
        %v359 = vadd.s32 %v348, 88
        %v360 = vadd.s32 %v348, 96
        %v361 = vadd.s32 %v348, 104
        %v362 = vadd.s32 %v348, 112
        %v363 = vadd.s32 %v348, 120
        %v364 = vadd.s32 %v348, 128
        %v365 = vadd.s32 %v348, 136
        %v366 = vadd.s32 %v348, 144
        %v367 = vadd.s32 %v348, 152
        %v368 = vadd.s32 %v348, 160
        %v369 = vadd.s32 %v348, 168
        %v370 = vadd.s32 %v348, 176
        %v371 = vadd.s32 %v348, 184
        %v372 = vadd.s32 %v348, 192
        %v373 = vadd.s32 %v348, 200
        %v374 = vadd.s32 %v348, 208
        %v375 = vadd.s32 %v348, 216
        %v376 = vadd.s32 %v348, 224
        %v377 = vadd.s32 %v348, 232
        %v378 = vadd.s32 %v348, 240
        %v379 = vadd.s32 %v348, 248
        %v380 = vstv %s346
        %v381 = vadd.s32 %v348, %v380
        %v382 = vadd.s32 %v349, %v380
        %v383 = vadd.s32 %v350, %v380
        %v384 = vadd.s32 %v351, %v380
        %v385 = vadd.s32 %v352, %v380
        %v386 = vadd.s32 %v353, %v380
        %v387 = vadd.s32 %v354, %v380
        %v388 = vadd.s32 %v355, %v380
        %v389 = vadd.s32 %v356, %v380
        %v390 = vadd.s32 %v357, %v380
        %v391 = vadd.s32 %v358, %v380
        %v392 = vadd.s32 %v359, %v380
        %v393 = vadd.s32 %v360, %v380
        %v394 = vadd.s32 %v361, %v380
        %v395 = vadd.s32 %v362, %v380
        %v396 = vadd.s32 %v363, %v380
        %v397 = vadd.s32 %v364, %v380
        %v398 = vadd.s32 %v365, %v380
        %v399 = vadd.s32 %v366, %v380
        %v400 = vadd.s32 %v367, %v380
        %v401 = vadd.s32 %v368, %v380
        %v402 = vadd.s32 %v369, %v380
        %v403 = vadd.s32 %v370, %v380
        %v404 = vadd.s32 %v371, %v380
        %v405 = vadd.s32 %v372, %v380
        %v406 = vadd.s32 %v373, %v380
        %v407 = vadd.s32 %v374, %v380
        %v408 = vadd.s32 %v375, %v380
        %v409 = vadd.s32 %v376, %v380
        %v410 = vadd.s32 %v377, %v380
        %v411 = vadd.s32 %v378, %v380
        %v412 = vadd.s32 %v379, %v380
        %v413 = vperm.slane %v345, 0
        %vm414 = vcmp.eq.s32.totalorder %v381, %v413
        %vm415 = vcmp.eq.s32.totalorder %v382, %v413
        %vm416 = vcmp.eq.s32.totalorder %v383, %v413
        %vm417 = vcmp.eq.s32.totalorder %v384, %v413
        %vm418 = vcmp.eq.s32.totalorder %v385, %v413
        %vm419 = vcmp.eq.s32.totalorder %v386, %v413
        %vm420 = vcmp.eq.s32.totalorder %v387, %v413
        %vm421 = vcmp.eq.s32.totalorder %v388, %v413
        %vm422 = vcmp.eq.s32.totalorder %v389, %v413
        %vm423 = vcmp.eq.s32.totalorder %v390, %v413
        %vm424 = vcmp.eq.s32.totalorder %v391, %v413
        %vm425 = vcmp.eq.s32.totalorder %v392, %v413
        %vm426 = vcmp.eq.s32.totalorder %v393, %v413
        %vm427 = vcmp.eq.s32.totalorder %v394, %v413
        %vm428 = vcmp.eq.s32.totalorder %v395, %v413
        %vm429 = vcmp.eq.s32.totalorder %v396, %v413
        %vm430 = vcmp.eq.s32.totalorder %v397, %v413
        %vm431 = vcmp.eq.s32.totalorder %v398, %v413
        %vm432 = vcmp.eq.s32.totalorder %v399, %v413
        %vm433 = vcmp.eq.s32.totalorder %v400, %v413
        %vm434 = vcmp.eq.s32.totalorder %v401, %v413
        %vm435 = vcmp.eq.s32.totalorder %v402, %v413
        %vm436 = vcmp.eq.s32.totalorder %v403, %v413
        %vm437 = vcmp.eq.s32.totalorder %v404, %v413
        %vm438 = vcmp.eq.s32.totalorder %v405, %v413
        %vm439 = vcmp.eq.s32.totalorder %v406, %v413
        %vm440 = vcmp.eq.s32.totalorder %v407, %v413
        %vm441 = vcmp.eq.s32.totalorder %v408, %v413
        %vm442 = vcmp.eq.s32.totalorder %v409, %v413
        %vm443 = vcmp.eq.s32.totalorder %v410, %v413
        %vm444 = vcmp.eq.s32.totalorder %v411, %v413
        %vm445 = vcmp.eq.s32.totalorder %v412, %v413
        %v446 = vsel %vm414, 1, 0
        %v447 = vsel %vm415, 1, 0
        %v448 = vsel %vm416, 1, 0
        %v449 = vsel %vm417, 1, 0
        %v450 = vsel %vm418, 1, 0
        %v451 = vsel %vm419, 1, 0
        %v452 = vsel %vm420, 1, 0
        %v453 = vsel %vm421, 1, 0
        %v454 = vsel %vm422, 1, 0
        %v455 = vsel %vm423, 1, 0
        %v456 = vsel %vm424, 1, 0
        %v457 = vsel %vm425, 1, 0
        %v458 = vsel %vm426, 1, 0
        %v459 = vsel %vm427, 1, 0
        %v460 = vsel %vm428, 1, 0
        %v461 = vsel %vm429, 1, 0
        %v462 = vsel %vm430, 1, 0
        %v463 = vsel %vm431, 1, 0
        %v464 = vsel %vm432, 1, 0
        %v465 = vsel %vm433, 1, 0
        %v466 = vsel %vm434, 1, 0
        %v467 = vsel %vm435, 1, 0
        %v468 = vsel %vm436, 1, 0
        %v469 = vsel %vm437, 1, 0
        %v470 = vsel %vm438, 1, 0
        %v471 = vsel %vm439, 1, 0
        %v472 = vsel %vm440, 1, 0
        %v473 = vsel %vm441, 1, 0
        %v474 = vsel %vm442, 1, 0
        %v475 = vsel %vm443, 1, 0
        %v476 = vsel %vm444, 1, 0
        %v477 = vsel %vm445, 1, 0
        %v478 = vcvt.s32.f32 %v446
        %v479 = vcvt.s32.f32 %v447
        %v480 = vcvt.s32.f32 %v448
        %v481 = vcvt.s32.f32 %v449
        %v482 = vcvt.s32.f32 %v450
        %v483 = vcvt.s32.f32 %v451
        %v484 = vcvt.s32.f32 %v452
        %v485 = vcvt.s32.f32 %v453
        %v486 = vcvt.s32.f32 %v454
        %v487 = vcvt.s32.f32 %v455
        %v488 = vcvt.s32.f32 %v456
        %v489 = vcvt.s32.f32 %v457
        %v490 = vcvt.s32.f32 %v458
        %v491 = vcvt.s32.f32 %v459
        %v492 = vcvt.s32.f32 %v460
        %v493 = vcvt.s32.f32 %v461
        %v494 = vcvt.s32.f32 %v462
        %v495 = vcvt.s32.f32 %v463
        %v496 = vcvt.s32.f32 %v464
        %v497 = vcvt.s32.f32 %v465
        %v498 = vcvt.s32.f32 %v466
        %v499 = vcvt.s32.f32 %v467
        %v500 = vcvt.s32.f32 %v468
        %v501 = vcvt.s32.f32 %v469
        %v502 = vcvt.s32.f32 %v470
        %v503 = vcvt.s32.f32 %v471
        %v504 = vcvt.s32.f32 %v472
        %v505 = vcvt.s32.f32 %v473
        %v506 = vcvt.s32.f32 %v474
        %v507 = vcvt.s32.f32 %v475
        %v508 = vcvt.s32.f32 %v476
        %v509 = vcvt.s32.f32 %v477
        %v510 = vld [vmem:[#allocation2] sm:$0xf]
        %512 = vst [vmem:[#allocation1] ss:$2 sm:$0xff] %v344
        %v513 = vld.sshfl [vmem:[#allocation1] sm:$0xff pattern:$0x75316420]
        %v514 = vld.sshfl [vmem:[#allocation1 + $0x8] sm:$0xff pattern:$0x75316420]
        %517 = vmatpush.msra.mxu0 %v493
        %518 = vmatpush.msra.mxu0 %v492
        %519 = vmatpush.msra.mxu0 %v491
        %520 = vmatpush.msra.mxu0 %v490
        %521 = vmatpush.msra.mxu0 %v489
        %522 = vmatpush.msra.mxu0 %v488
        %523 = vmatpush.msra.mxu0 %v487
        %524 = vmatpush.msra.mxu0 %v486
        %525 = vmatpush.msra.mxu0 %v485
        %526 = vmatpush.msra.mxu0 %v484
        %527 = vmatpush.msra.mxu0 %v483
        %528 = vmatpush.msra.mxu0 %v482
        %529 = vmatpush.msra.mxu0 %v481
        %530 = vmatpush.msra.mxu0 %v480
        %531 = vmatpush.msra.mxu0 %v479
        %532 = vmatpush.msra.mxu0 %v478
        %533 = vmatmul.f32.gmra.mxu0 %v513
        %v534 = vpop.f32.mrf.mxu0
        %v535 = vadd.f32 0.0, %v534
        %536 = vdwg.mxu0
        %537 = vmatpush.msra.mxu0 %v509
        %538 = vmatpush.msra.mxu0 %v508
        %539 = vmatpush.msra.mxu0 %v507
        %540 = vmatpush.msra.mxu0 %v506
        %541 = vmatpush.msra.mxu0 %v505
        %542 = vmatpush.msra.mxu0 %v504
        %543 = vmatpush.msra.mxu0 %v503
        %544 = vmatpush.msra.mxu0 %v502
        %545 = vmatpush.msra.mxu0 %v501
        %546 = vmatpush.msra.mxu0 %v500
        %547 = vmatpush.msra.mxu0 %v499
        %548 = vmatpush.msra.mxu0 %v498
        %549 = vmatpush.msra.mxu0 %v497
        %550 = vmatpush.msra.mxu0 %v496
        %551 = vmatpush.msra.mxu0 %v495
        %552 = vmatpush.msra.mxu0 %v494
        %553 = vmatmul.f32.gmra.mxu0 %v514
        %v554 = vpop.f32.mrf.mxu0
        %v555 = vadd.f32 %v535, %v554
        %556 = vdwg.mxu0
        %v557 = vadd.f32 %v510, %v555
        %vm558 = vcmask 60416
        %559 = vst.msk [vmem:[#allocation2] sm:$0xf] %vm558, %v557
        // Predicated region
        $region57: #{tpu_custom_call.1} parent=35 // pred_check
          %p560 = pneg %p338
        $region58: #{tpu_custom_call.1} parent=35 // pred_check_branch
          %562 = sbr.rel (%p560) target = $region60
        $region59: #{tpu_custom_call.1} parent=35 // pred_region
          %v563 = vld [vmem:[%s289] sm:$0x1]
          %v564 = vld [vmem:[%s299] sm:$0xf]
          %v565 = vld [vmem:[#allocation2] sm:$0xf]
          %v566 = vsub.f32 %v565, %v564
          %v567 = vand.u32 2147483647, %v566
          %v569 = vperm.slane %v563, 0
          %v571 = vmul.f32 %v569, %v567
          %v572 = vsel %vm558, %v571, 0.0
          %573 = vadd.xlane.f32.xlu0 %v572
          %v574 = vpop.xlane.xlu0 %573
          %v575 = vrot.slane %v574, 4
          %v576 = vadd.f32 %v574, %v575
          %v577 = vrot.slane %v576, 2
          %v578 = vadd.f32 %v576, %v577
          %v579 = vrot.slane %v578, 1
          %v580 = vadd.f32 %v578, %v579
          %s581 = vtos %v580
          %v582 = vstv %s581
          %583 = vst [vmem:[%s336] sm:$0x1] %v582
        $region60: #{tpu_custom_call.1} parent=35 // pred_fallthru
          _
        %s584 = sand.u32 %s153, 1
        %s585 = scalar_lea.sflag [#allocation5], %s584
        %s586 = sand.u32 %s153, 1
        %s587 = scalar_lea.vmem [#allocation11], %s586
        // Predicated region
        $region61: #{tpu_custom_call.1} parent=35 // pred_check
          %p588 = pneg %p163
        $region62: #{tpu_custom_call.1} parent=35 // pred_check_branch
          %590 = sbr.rel (%p588) target = $region64
        $region63: #{tpu_custom_call.1} parent=35 // pred_region
          %592 = vsyncadd %s585, 0
          %s593 = scalar_lea.hbm %s4, %s31
          %s595 = sshll.u32 %s587, 4
          %s596 = int_to_ptr.vmem [resolvable:$true] %s595
          %s597 = sshll.u32 %s593, 4
          %s598 = int_to_ptr.hbm [resolvable:$true] %s597
          %600 = dma.vmem_to_hbm [thread:$0]  %s596, 16, %s598, %s585
        $region64: #{tpu_custom_call.1} parent=35 // pred_fallthru
          _
      $region36: #{tpu_custom_call.1} parent=5 // pred_fallthru
        _
      %p601 = scmp.le.s32.totalorder 2, %s22
      // Predicated region
      $region65: #{tpu_custom_call.1} parent=5 // pred_check
        %p602 = pneg %p601
      $region66: #{tpu_custom_call.1} parent=5 // pred_check_branch
        %604 = sbr.rel (%p602) target = $region68
      $region67: #{tpu_custom_call.1} parent=5 // pred_region
        %s605 = ssub.s32 %s22, 2
        // Predicated region
        $region69: #{tpu_custom_call.1} parent=67 // pred_check
          %p606 = pneg %p169
        $region70: #{tpu_custom_call.1} parent=67 // pred_check_branch
          %608 = sbr.rel (%p606) target = $region72
        $region71: #{tpu_custom_call.1} parent=67 // pred_region
          %s609 = sand.u32 %s154, 1
          %s610 = scalar_lea.sflag [#allocation5], %s609
          %s611 = sand.u32 %s154, 1
          %s612 = scalar_lea.vmem [#allocation11], %s611
          %614 = dma.done %s610, 16
        $region72: #{tpu_custom_call.1} parent=67 // pred_fallthru
          _
      $region68: #{tpu_custom_call.1} parent=5 // pred_fallthru
        _
    $region6: #{tpu_custom_call.1} parent=1 // loop_footer
      %s26 = sadd.s32 1, %s22
    $region7: #{tpu_custom_call.1} parent=1 // loop_footer_branch
      %21 = sbr.rel target = $region3
    $region8: #{tpu_custom_call.1} parent=1 // loop_exit
      _
    %615 = vsyncpa [#allocation4], 1
    %s616 = scalar_lea.sflag [#allocation4], 1
    %617 = vsyncpa %s616, 1
    %618 = vsyncpa [#allocation7], 1
    %s619 = scalar_lea.sflag [#allocation7], 1
    %620 = vsyncpa %s619, 1
    %621 = vsyncpa [#allocation10], 1
    %s622 = scalar_lea.sflag [#allocation10], 1
    %623 = vsyncpa %s622, 1
    %624 = vsyncpa [#allocation5], 1
    %s625 = scalar_lea.sflag [#allocation5], 1
    %626 = vsyncpa %s625, 1

</llo_original>
